<compile_context>
chip_gen: v5e
topology: v5e:2x2
jax: 0.10.0
libtpu: 0.0.40
codegen_flags: <defaults>
</compile_context>

<pallas_src>
import functools

import jax
import jax.numpy as jnp
from jax import lax
from jax.experimental import pallas as pl
from jax.experimental.pallas import tpu as pltpu


def _tcc_fused_kernel(embs_ref, idx_ref, out_ref, *,
                      batch_size, num_steps, num_channels,
                      n_pad, cycles_per_step, total_cycles,
                      temperature, variance_lambda, normalize_indices):
    """Fused TCC loss: alignment (cycle_length=2, 'l2') + regression_mse_var."""
    B, T, C = batch_size, num_steps, num_channels
    BT = B * T
    N = n_pad
    inv_scale = 1.0 / (float(C) * float(temperature))
    NEG = jnp.float32(-1e30)
    inv_seq_len = 1.0 / (float(T) + 1e-7)

    EF = embs_ref[...]                      # [B*T, C] all embeddings, VMEM-resident
    idx = idx_ref[...]                      # [N, 3] int32: (cycle_a, cycle_b, n_idx)
    ca = idx[:, 0:1]                        # [N, 1] cycle start sequence
    cb = idx[:, 1:2]                        # [N, 1] matched sequence
    ni = idx[:, 2:3]                        # [N, 1] random query frame

    a0 = ca * T                             # first flat column of sequence a
    q_col = a0 + ni                         # flat query column
    r = lax.broadcasted_iota(jnp.int32, (N, BT), 1)   # flat frame index 0..B*T-1

    # --- cycle step 0: gather all query frames in one selection matmul (MXU) ---
    labels = (r == q_col).astype(jnp.float32)                       # live only up to q1
    q1 = jnp.dot(labels, EF, preferred_element_type=jnp.float32)    # [N, C]
    q1_sq = jnp.sum(q1 * q1, axis=1, keepdims=True)                 # [N, 1]

    # Row squared norms as a lane-dense [1, B*T] row via an MXU matmul
    # (avoids a sublane->lane transpose). 8 ones-rows keep the matmul tile-shaped.
    ef_sq = EF * EF
    ones8 = jnp.ones((8, C), dtype=jnp.float32)
    sq8 = lax.dot_general(ones8, ef_sq, (((1,), (1,)), ((), ())),
                          preferred_element_type=jnp.float32)       # [8, B*T]
    sq_row = sq8[0:1, :]                                            # [1, B*T]

    # --- cycle step 1: soft-align each query against its matched sequence b ---
    g1 = lax.dot_general(q1, EF, (((1,), (1,)), ((), ())),
                         preferred_element_type=jnp.float32)        # [N, B*T]
    sim1 = -(sq_row + q1_sq - 2.0 * g1) * inv_scale
    b0 = cb * T
    in_b = jnp.logical_and(r >= b0, r < b0 + T)                     # frames of sequence b
    sim1 = jnp.where(in_b, sim1, NEG)                               # softmax over b only
    m1 = jnp.max(sim1, axis=1, keepdims=True)
    e1 = jnp.exp(sim1 - m1)
    # Post-matmul normalization: matmul the unnormalized weights, then scale the small
    # [N, C] result by the exact reciprocal of the softmax denominator.
    q2 = jnp.dot(e1, EF, preferred_element_type=jnp.float32)        # [N, C]
    q2 = q2 * (1.0 / jnp.sum(e1, axis=1, keepdims=True))
    q2_sq = jnp.sum(q2 * q2, axis=1, keepdims=True)

    # --- cycle step 2: cycle back to sequence a -> pre-softmax logits ---
    g2 = lax.dot_general(q2, EF, (((1,), (1,)), ((), ())),
                         preferred_element_type=jnp.float32)        # [N, B*T]
    logits = -(sq_row + q2_sq - 2.0 * g2) * inv_scale
    in_a = jnp.logical_and(r >= a0, r < a0 + T)                     # frames of sequence a
    logits = jnp.where(in_a, logits, NEG)                           # softmax over a only

    # --- cycle-back regression (regression_mse_var); beta2 never materialized ---
    m2 = jnp.max(logits, axis=1, keepdims=True)
    e2 = jnp.exp(logits - m2)                                       # exactly 0 off seq a
    inv_den = 1.0 / jnp.sum(e2, axis=1, keepdims=True)              # exact [N, 1]

    steps = (r - a0).astype(jnp.float32)                            # frame index in seq a
    if normalize_indices:
        steps = steps * inv_seq_len                                 # seq_len = T (reference default)
        true_time = ni.astype(jnp.float32) * inv_seq_len            # labels hit column a0+ni
    else:
        true_time = ni.astype(jnp.float32)

    pred_time = jnp.sum(steps * e2, axis=1, keepdims=True) * inv_den   # [N, 1]
    diff = steps - pred_time
    pred_var = jnp.sum(diff * diff * e2, axis=1, keepdims=True) * inv_den
    log_var = jnp.log(pred_var + 1e-7)
    err = true_time - pred_time
    per_cycle = pl.reciprocal(pred_var + 1e-7) * (err * err) + variance_lambda * log_var

    # Mask padded cycle rows; emit this step's partial sum as an aligned (8,128) tile.
    n_valid = jnp.minimum(cycles_per_step,
                          total_cycles - pl.program_id(0) * cycles_per_step)
    row = lax.broadcasted_iota(jnp.int32, (N, 1), 0)
    partial_sum = jnp.sum(jnp.where(row < n_valid, per_cycle, 0.0))
    ri = lax.broadcasted_iota(jnp.int32, (8, 128), 0)
    ci = lax.broadcasted_iota(jnp.int32, (8, 128), 1)
    out_ref[...] = jnp.where(jnp.logical_and(ri == 0, ci == 0), partial_sum, 0.0)


def tcc_loss(predictions, mask, key, *,
             loss_type="regression_mse_var",
             variance_lambda=0.001,
             normalize_indices=True,
             normalize_embeddings=False,
             similarity_type="l2",
             num_cycles=20,
             cycle_length=2,
             temperature=0.1,
             num_splits=2):
    assert loss_type == "regression_mse_var"
    assert similarity_type == "l2"
    assert cycle_length == 2
    # TODO(synk): 'cosine' similarity and regression_mse / huber / classification variants not implemented.

    B, C, T = predictions.shape
    embs = jnp.transpose(predictions, (0, 2, 1)).astype(jnp.float32)     # [B, T, C]
    if normalize_embeddings:
        embs = embs / (jnp.linalg.norm(embs, axis=-1, keepdims=True) + 1e-12)
    real_lens = jnp.sum(mask, axis=-1).reshape(B).astype(jnp.float32)    # mask.sum(-1).squeeze()

    # gen_cycles: random start / match sequence per cycle (deterministic PRNG glue).
    k1, k2, k3 = jax.random.split(key, 3)
    cyc_a = jax.random.randint(k1, (num_cycles,), 0, B, dtype=jnp.int32)
    cyc_b = ((cyc_a + jax.random.randint(k2, (num_cycles,), 1, B, dtype=jnp.int32)) % B
             ).astype(jnp.int32)
    # n_idx = floor(U[0,1) * real_len(start sequence))
    u = jax.random.uniform(k3, (num_cycles,), dtype=jnp.float32)
    n_idx = jnp.floor(u * real_lens[cyc_a]).astype(jnp.int32)

    # Split cycles across grid steps (second TensorCore on v7x); pad each step's block
    # of cycle indices to a sublane-aligned row count and pack (ca, cb, ni) into one
    # int32 array -> one DMA / one BlockSpec instead of three.
    num_splits = max(1, min(int(num_splits), num_cycles))
    cycles_per_step = -(-num_cycles // num_splits)           # ceil
    n_pad = -(-cycles_per_step // 8) * 8                     # sublane-aligned rows per step

    packed = jnp.stack([cyc_a, cyc_b, n_idx], axis=1)        # [num_cycles, 3]
    padded = jnp.zeros((num_splits, n_pad, 3), dtype=jnp.int32)
    split_id = jnp.arange(num_cycles) // cycles_per_step
    row_id = jnp.arange(num_cycles) % cycles_per_step
    padded = padded.at[split_id, row_id].set(packed)
    idx_all = padded.reshape(num_splits * n_pad, 3)

    embs_flat = embs.reshape(B * T, C)                        # [B*T, C]

    # Explicit scoped-VMEM budget sized from the actual buffers (+ headroom), capped
    # below the v7x 64 MiB physical ceiling.
    def _rup(x, m):
        return -(-x // m) * m
    ef_bytes = _rup(B * T, 8) * _rup(C, 128) * 4              # single-buffered (Buffered(1))
    idx_bytes = 2 * num_splits * n_pad * 128 * 4
    out_bytes = 2 * num_splits * 8 * 128 * 4
    tmp_bytes = 14 * n_pad * _rup(B * T, 128) * 4             # ~[N, B*T] f32 temporaries
    vmem_limit = int(min(max(ef_bytes + idx_bytes + out_bytes + tmp_bytes + (8 << 20),
                             16 << 20), 64 << 20))

    kernel = functools.partial(
        _tcc_fused_kernel, batch_size=B, num_steps=T, num_channels=C,
        n_pad=n_pad, cycles_per_step=cycles_per_step, total_cycles=num_cycles,
        temperature=temperature, variance_lambda=variance_lambda,
        normalize_indices=normalize_indices)

    partials = pl.pallas_call(
        kernel,
        out_shape=jax.ShapeDtypeStruct((num_splits * 8, 128), jnp.float32),
        grid_spec=pl.GridSpec(
            grid=(num_splits,),
            in_specs=[
                pl.BlockSpec((B * T, C), lambda i: (0, 0),
                             pipeline_mode=pl.Buffered(1)),   # EF resident once, single buffer
                pl.BlockSpec((n_pad, 3), lambda i: (i, 0),
                             pipeline_mode=pl.Buffered(1)),   # tiny packed index block
            ],
            out_specs=pl.BlockSpec((8, 128), lambda i: (i, 0)),
        ),
        compiler_params=pltpu.CompilerParams(
            dimension_semantics=("parallel",),
            vmem_limit_bytes=vmem_limit),
    )(embs_flat, idx_all)
    # Per-step partial sums live at [i*8, 0]; everything else is zero.
    return jnp.sum(partials) * (1.0 / float(num_cycles))


if __name__ == "__main__":
    key = jax.random.PRNGKey(0)
    k_pred, k_loss = jax.random.split(key)

    B, C, T = 8, 32, 16
    predictions = jax.random.normal(k_pred, (B, C, T), dtype=jnp.float32)
    valid_lens = jnp.array([16, 12, 10, 16, 8, 14, 16, 9], dtype=jnp.int32)
    # mask: [B, 1, T], so mask.sum(-1).squeeze() -> [B] real sequence lengths.
    mask = (jnp.arange(T)[None, None, :] < valid_lens[:, None, None]).astype(jnp.float32)

    loss = tcc_loss(predictions, mask, k_loss)
    loss = jax.block_until_ready(loss)
    assert jnp.isfinite(loss), f"non-finite loss: {loss}"
    print("KERNEL_OK")
</pallas_src>

<mosaic_0001>
module attributes {stable_mosaic.version = 11 : i64} {
  func.func @_tcc_fused_kernel(%arg0: i32, %arg1: memref<128x32xf32, #tpu.memory_space<vmem>>, %arg2: memref<16x3xi32, #tpu.memory_space<vmem>>, %arg3: memref<8x128xf32, #tpu.memory_space<vmem>>) attributes {dimension_semantics = [#tpu.dimension_semantics<parallel>], iteration_bounds = array<i64: 2>, scalar_prefetch = 0 : i64, scratch_operands = 0 : i64, tpu.core_type = #tpu.core_type<tc>, window_params = [{pipeline_mode = #tpu.pipeline_mode<synchronous>, transform_indices = @transform_0, window_bounds = array<i64: 128, 32>}, {pipeline_mode = #tpu.pipeline_mode<synchronous>, transform_indices = @transform_1, window_bounds = array<i64: 16, 3>}, {transform_indices = @transform_2, window_bounds = array<i64: 8, 128>}]} {
    %c0 = arith.constant 0 : index
    %c0_0 = arith.constant 0 : index
    %0 = vector.load %arg1[%c0, %c0_0] : memref<128x32xf32, #tpu.memory_space<vmem>>, vector<128x32xf32>
    %c0_1 = arith.constant 0 : index
    %c0_2 = arith.constant 0 : index
    %1 = vector.load %arg2[%c0_1, %c0_2] : memref<16x3xi32, #tpu.memory_space<vmem>>, vector<16x3xi32>
    %2 = vector.extract_strided_slice %1 {offsets = [0, 0], sizes = [16, 1], strides = [1, 1]} : vector<16x3xi32> to vector<16x1xi32>
    %3 = vector.extract_strided_slice %1 {offsets = [0, 1], sizes = [16, 1], strides = [1, 1]} : vector<16x3xi32> to vector<16x1xi32>
    %4 = vector.extract_strided_slice %1 {offsets = [0, 2], sizes = [16, 1], strides = [1, 1]} : vector<16x3xi32> to vector<16x1xi32>
    %c16_i32 = arith.constant 16 : i32
    %5 = vector.broadcast %c16_i32 : i32 to vector<16x1xi32>
    %6 = arith.muli %2, %5 : vector<16x1xi32>
    %7 = arith.addi %6, %4 : vector<16x1xi32>
    %8 = tpu.iota {dimensions = array<i32: 1>} : vector<16x128xi32>
    %9 = vector.broadcast %7 : vector<16x1xi32> to vector<16x128xi32>
    %10 = arith.cmpi eq, %8, %9 : vector<16x128xi32>
    %11 = arith.extui %10 : vector<16x128xi1> to vector<16x128xi32>
    %12 = arith.sitofp %11 : vector<16x128xi32> to vector<16x128xf32>
    %cst = arith.constant dense<0.000000e+00> : vector<16x32xf32>
    %13 = tpu.matmul %12, %0, %cst {dimension_numbers = #tpu.dot_dimension_numbers<[1], [0], [0], [1], [0, 0, 1, 1], [], []>} : vector<16x128xf32>, vector<128x32xf32>, vector<16x32xf32> -> vector<16x32xf32>
    %14 = arith.mulf %13, %13 : vector<16x32xf32>
    %cst_3 = arith.constant dense<0.000000e+00> : vector<16xf32>
    %15 = vector.multi_reduction <add>, %14, %cst_3 [1] : vector<16x32xf32> to vector<16xf32>
    %16 = vector.shape_cast %15 : vector<16xf32> to vector<16x1xf32>
    %17 = arith.mulf %0, %0 : vector<128x32xf32>
    %cst_4 = arith.constant 1.000000e+00 : f32
    %18 = vector.broadcast %cst_4 : f32 to vector<8x32xf32>
    %cst_5 = arith.constant dense<0.000000e+00> : vector<8x128xf32>
    %19 = tpu.matmul %18, %17, %cst_5 {dimension_numbers = #tpu.dot_dimension_numbers<[1], [1], [0], [0], [0, 0, 1, 0], [], []>} : vector<8x32xf32>, vector<128x32xf32>, vector<8x128xf32> -> vector<8x128xf32>
    %20 = vector.extract_strided_slice %19 {offsets = [0, 0], sizes = [1, 128], strides = [1, 1]} : vector<8x128xf32> to vector<1x128xf32>
    %cst_6 = arith.constant dense<0.000000e+00> : vector<16x128xf32>
    %21 = tpu.matmul %13, %0, %cst_6 {dimension_numbers = #tpu.dot_dimension_numbers<[1], [1], [0], [0], [0, 0, 1, 0], [], []>} : vector<16x32xf32>, vector<128x32xf32>, vector<16x128xf32> -> vector<16x128xf32>
    %22 = vector.broadcast %20 : vector<1x128xf32> to vector<16x128xf32>
    %23 = vector.broadcast %16 : vector<16x1xf32> to vector<16x128xf32>
    %24 = arith.addf %22, %23 : vector<16x128xf32>
    %cst_7 = arith.constant 2.000000e+00 : f32
    %25 = vector.broadcast %cst_7 : f32 to vector<16x128xf32>
    %26 = arith.mulf %25, %21 : vector<16x128xf32>
    %27 = arith.subf %24, %26 : vector<16x128xf32>
    %cst_8 = arith.constant 0.000000e+00 : f32
    %28 = vector.broadcast %cst_8 : f32 to vector<16x128xf32>
    %29 = arith.subf %28, %27 : vector<16x128xf32>
    %cst_9 = arith.constant 3.125000e-01 : f32
    %30 = vector.broadcast %cst_9 : f32 to vector<16x128xf32>
    %31 = arith.mulf %29, %30 : vector<16x128xf32>
    %c16_i32_10 = arith.constant 16 : i32
    %32 = vector.broadcast %c16_i32_10 : i32 to vector<16x1xi32>
    %33 = arith.muli %3, %32 : vector<16x1xi32>
    %34 = vector.broadcast %33 : vector<16x1xi32> to vector<16x128xi32>
    %35 = arith.cmpi sge, %8, %34 : vector<16x128xi32>
    %c16_i32_11 = arith.constant 16 : i32
    %36 = vector.broadcast %c16_i32_11 : i32 to vector<16x1xi32>
    %37 = arith.addi %33, %36 : vector<16x1xi32>
    %38 = vector.broadcast %37 : vector<16x1xi32> to vector<16x128xi32>
    %39 = arith.cmpi slt, %8, %38 : vector<16x128xi32>
    %40 = arith.andi %35, %39 : vector<16x128xi1>
    %cst_12 = arith.constant -1.000000e+30 : f32
    %41 = vector.broadcast %cst_12 : f32 to vector<16x128xf32>
    %42 = arith.select %40, %31, %41 : vector<16x128xi1>, vector<16x128xf32>
    %cst_13 = arith.constant dense<0xFF800000> : vector<16xf32>
    %43 = vector.multi_reduction <maximumf>, %42, %cst_13 [1] : vector<16x128xf32> to vector<16xf32>
    %44 = vector.shape_cast %43 : vector<16xf32> to vector<16x1xf32>
    %45 = vector.broadcast %44 : vector<16x1xf32> to vector<16x128xf32>
    %46 = arith.subf %42, %45 : vector<16x128xf32>
    %47 = math.exp %46 : vector<16x128xf32>
    %cst_14 = arith.constant dense<0.000000e+00> : vector<16x32xf32>
    %48 = tpu.matmul %47, %0, %cst_14 {dimension_numbers = #tpu.dot_dimension_numbers<[1], [0], [0], [1], [0, 0, 1, 1], [], []>} : vector<16x128xf32>, vector<128x32xf32>, vector<16x32xf32> -> vector<16x32xf32>
    %cst_15 = arith.constant dense<0.000000e+00> : vector<16xf32>
    %49 = vector.multi_reduction <add>, %47, %cst_15 [1] : vector<16x128xf32> to vector<16xf32>
    %50 = vector.shape_cast %49 : vector<16xf32> to vector<16x1xf32>
    %cst_16 = arith.constant 1.000000e+00 : f32
    %51 = vector.broadcast %cst_16 : f32 to vector<16x1xf32>
    %52 = arith.divf %51, %50 : vector<16x1xf32>
    %53 = vector.broadcast %52 : vector<16x1xf32> to vector<16x32xf32>
    %54 = arith.mulf %48, %53 : vector<16x32xf32>
    %55 = arith.mulf %54, %54 : vector<16x32xf32>
    %cst_17 = arith.constant dense<0.000000e+00> : vector<16xf32>
    %56 = vector.multi_reduction <add>, %55, %cst_17 [1] : vector<16x32xf32> to vector<16xf32>
    %57 = vector.shape_cast %56 : vector<16xf32> to vector<16x1xf32>
    %cst_18 = arith.constant dense<0.000000e+00> : vector<16x128xf32>
    %58 = tpu.matmul %54, %0, %cst_18 {dimension_numbers = #tpu.dot_dimension_numbers<[1], [1], [0], [0], [0, 0, 1, 0], [], []>} : vector<16x32xf32>, vector<128x32xf32>, vector<16x128xf32> -> vector<16x128xf32>
    %59 = vector.broadcast %20 : vector<1x128xf32> to vector<16x128xf32>
    %60 = vector.broadcast %57 : vector<16x1xf32> to vector<16x128xf32>
    %61 = arith.addf %59, %60 : vector<16x128xf32>
    %cst_19 = arith.constant 2.000000e+00 : f32
    %62 = vector.broadcast %cst_19 : f32 to vector<16x128xf32>
    %63 = arith.mulf %62, %58 : vector<16x128xf32>
    %64 = arith.subf %61, %63 : vector<16x128xf32>
    %cst_20 = arith.constant 0.000000e+00 : f32
    %65 = vector.broadcast %cst_20 : f32 to vector<16x128xf32>
    %66 = arith.subf %65, %64 : vector<16x128xf32>
    %cst_21 = arith.constant 3.125000e-01 : f32
    %67 = vector.broadcast %cst_21 : f32 to vector<16x128xf32>
    %68 = arith.mulf %66, %67 : vector<16x128xf32>
    %69 = vector.broadcast %6 : vector<16x1xi32> to vector<16x128xi32>
    %70 = arith.cmpi sge, %8, %69 : vector<16x128xi32>
    %c16_i32_22 = arith.constant 16 : i32
    %71 = vector.broadcast %c16_i32_22 : i32 to vector<16x1xi32>
    %72 = arith.addi %6, %71 : vector<16x1xi32>
    %73 = vector.broadcast %72 : vector<16x1xi32> to vector<16x128xi32>
    %74 = arith.cmpi slt, %8, %73 : vector<16x128xi32>
    %75 = arith.andi %70, %74 : vector<16x128xi1>
    %cst_23 = arith.constant -1.000000e+30 : f32
    %76 = vector.broadcast %cst_23 : f32 to vector<16x128xf32>
    %77 = arith.select %75, %68, %76 : vector<16x128xi1>, vector<16x128xf32>
    %cst_24 = arith.constant dense<0xFF800000> : vector<16xf32>
    %78 = vector.multi_reduction <maximumf>, %77, %cst_24 [1] : vector<16x128xf32> to vector<16xf32>
    %79 = vector.shape_cast %78 : vector<16xf32> to vector<16x1xf32>
    %80 = vector.broadcast %79 : vector<16x1xf32> to vector<16x128xf32>
    %81 = arith.subf %77, %80 : vector<16x128xf32>
    %82 = math.exp %81 : vector<16x128xf32>
    %cst_25 = arith.constant dense<0.000000e+00> : vector<16xf32>
    %83 = vector.multi_reduction <add>, %82, %cst_25 [1] : vector<16x128xf32> to vector<16xf32>
    %84 = vector.shape_cast %83 : vector<16xf32> to vector<16x1xf32>
    %cst_26 = arith.constant 1.000000e+00 : f32
    %85 = vector.broadcast %cst_26 : f32 to vector<16x1xf32>
    %86 = arith.divf %85, %84 : vector<16x1xf32>
    %87 = vector.broadcast %6 : vector<16x1xi32> to vector<16x128xi32>
    %88 = arith.subi %8, %87 : vector<16x128xi32>
    %89 = arith.sitofp %88 : vector<16x128xi32> to vector<16x128xf32>
    %cst_27 = arith.constant 6.250000e-02 : f32
    %90 = vector.broadcast %cst_27 : f32 to vector<16x128xf32>
    %91 = arith.mulf %89, %90 : vector<16x128xf32>
    %92 = arith.sitofp %4 : vector<16x1xi32> to vector<16x1xf32>
    %cst_28 = arith.constant 6.250000e-02 : f32
    %93 = vector.broadcast %cst_28 : f32 to vector<16x1xf32>
    %94 = arith.mulf %92, %93 : vector<16x1xf32>
    %95 = arith.mulf %91, %82 : vector<16x128xf32>
    %cst_29 = arith.constant dense<0.000000e+00> : vector<16xf32>
    %96 = vector.multi_reduction <add>, %95, %cst_29 [1] : vector<16x128xf32> to vector<16xf32>
    %97 = vector.shape_cast %96 : vector<16xf32> to vector<16x1xf32>
    %98 = arith.mulf %97, %86 : vector<16x1xf32>
    %99 = vector.broadcast %98 : vector<16x1xf32> to vector<16x128xf32>
    %100 = arith.subf %91, %99 : vector<16x128xf32>
    %101 = arith.mulf %100, %100 : vector<16x128xf32>
    %102 = arith.mulf %101, %82 : vector<16x128xf32>
    %cst_30 = arith.constant dense<0.000000e+00> : vector<16xf32>
    %103 = vector.multi_reduction <add>, %102, %cst_30 [1] : vector<16x128xf32> to vector<16xf32>
    %104 = vector.shape_cast %103 : vector<16xf32> to vector<16x1xf32>
    %105 = arith.mulf %104, %86 : vector<16x1xf32>
    %cst_31 = arith.constant 1.000000e-07 : f32
    %106 = vector.broadcast %cst_31 : f32 to vector<16x1xf32>
    %107 = arith.addf %105, %106 : vector<16x1xf32>
    %108 = math.log %107 : vector<16x1xf32>
    %109 = arith.subf %94, %98 : vector<16x1xf32>
    %cst_32 = arith.constant 1.000000e-07 : f32
    %110 = vector.broadcast %cst_32 : f32 to vector<16x1xf32>
    %111 = arith.addf %105, %110 : vector<16x1xf32>
    %112 = tpu.reciprocal %111 : vector<16x1xf32> -> vector<16x1xf32>
    %113 = arith.mulf %109, %109 : vector<16x1xf32>
    %114 = arith.mulf %112, %113 : vector<16x1xf32>
    %cst_33 = arith.constant 1.000000e-03 : f32
    %115 = vector.broadcast %cst_33 : f32 to vector<16x1xf32>
    %116 = arith.mulf %115, %108 : vector<16x1xf32>
    %117 = arith.addf %114, %116 : vector<16x1xf32>
    %c10_i32 = arith.constant 10 : i32
    %118 = arith.muli %arg0, %c10_i32 : i32
    %c20_i32 = arith.constant 20 : i32
    %119 = arith.subi %c20_i32, %118 : i32
    %c10_i32_34 = arith.constant 10 : i32
    %120 = arith.minsi %c10_i32_34, %119 : i32
    %121 = tpu.iota {dimensions = array<i32: 0>} : vector<16x1xi32>
    %122 = vector.broadcast %120 : i32 to vector<16x1xi32>
    %123 = arith.cmpi slt, %121, %122 : vector<16x1xi32>
    %cst_35 = arith.constant 0.000000e+00 : f32
    %124 = vector.broadcast %cst_35 : f32 to vector<16x1xf32>
    %125 = arith.select %123, %117, %124 : vector<16x1xi1>, vector<16x1xf32>
    %126 = vector.shape_cast %125 : vector<16x1xf32> to vector<1x16x1xf32>
    %cst_36 = arith.constant dense<0.000000e+00> : vector<1xf32>
    %127 = vector.multi_reduction <add>, %126, %cst_36 [1, 2] : vector<1x16x1xf32> to vector<1xf32>
    %128 = vector.shape_cast %127 : vector<1xf32> to vector<1x1x1xf32>
    %129 = vector.extract %128[0, 0, 0] : f32 from vector<1x1x1xf32>
    %130 = tpu.iota {dimensions = array<i32: 0>} : vector<8x128xi32>
    %131 = tpu.iota {dimensions = array<i32: 1>} : vector<8x128xi32>
    %c0_i32 = arith.constant 0 : i32
    %132 = vector.broadcast %c0_i32 : i32 to vector<8x128xi32>
    %133 = arith.cmpi eq, %130, %132 : vector<8x128xi32>
    %c0_i32_37 = arith.constant 0 : i32
    %134 = vector.broadcast %c0_i32_37 : i32 to vector<8x128xi32>
    %135 = arith.cmpi eq, %131, %134 : vector<8x128xi32>
    %136 = arith.andi %133, %135 : vector<8x128xi1>
    %cst_38 = arith.constant 0.000000e+00 : f32
    %137 = vector.broadcast %129 : f32 to vector<8x128xf32>
    %138 = vector.broadcast %cst_38 : f32 to vector<8x128xf32>
    %139 = arith.select %136, %137, %138 : vector<8x128xi1>, vector<8x128xf32>
    %c0_39 = arith.constant 0 : index
    %c0_40 = arith.constant 0 : index
    %140 = vector.load %arg3[%c0_39, %c0_40] : memref<8x128xf32, #tpu.memory_space<vmem>>, vector<8x128xf32>
    tpu.vector_store %arg3[%c0_39, %c0_40], %139 {strides = array<i32>} : memref<8x128xf32, #tpu.memory_space<vmem>>, vector<8x128xf32>,
    return
  }
  func.func @transform_0(%arg0: i32) -> (i32, i32) {
    %c0_i32 = arith.constant 0 : i32
    %c0_i32_0 = arith.constant 0 : i32
    %c0_i32_1 = arith.constant 0 : i32
    return %c0_i32, %c0_i32_0 : i32, i32
  }
  func.func @transform_1(%arg0: i32) -> (i32, i32) {
    %c0_i32 = arith.constant 0 : i32
    %c0_i32_0 = arith.constant 0 : i32
    return %arg0, %c0_i32 : i32, i32
  }
  func.func @transform_2(%arg0: i32) -> (i32, i32) {
    %c0_i32 = arith.constant 0 : i32
    %c0_i32_0 = arith.constant 0 : i32
    return %arg0, %c0_i32 : i32, i32
  }
}

</mosaic_0001>

<llo_original>
// kernel: tpu_custom_call.1
$region0: #{tpu_custom_call.1}
  #allocation0 [shape = 'u32[]', space=smem, size = 0x4, offset = 0x4, fixed_abs, tag = 'smem constant byte address 0x4 - core index']
  #allocation1 [shape = 'u32[72,128]{1,0:T(1,128)}', space=vmem, size = 0x9000, scoped, tag = 'internal scratch']
  %s0 = inlined_call_operand.vmem [shape: f32[128,32], index: 0, kind: input, shape index: {}]
  %s1 = inlined_call_operand.vmem [shape: s32[32,3], index: 1, kind: input, shape index: {}]
  %s2 = inlined_call_operand.hbm [shape: f32[16,128], index: 2, kind: output, shape index: {}]
  %s3 = sld [smem:[#allocation0]]
  $region41: #{tpu_custom_call.1} parent=0
    _
  %s5 = ssub.s32 1, %s3
  %s6 = scalar_select 0, %s5, %s3
  $region1: #{tpu_custom_call.1} parent=0
    #allocation2 [shape = 'u8[8192]{0}', space=vmem, size = 0x2000, scoped, tag = 'output window, operand 0']
    #allocation3 [shape = 's32[2]{0}', space=sflag, size = 0x8, scoped, tag = 'scoped memory for tpu_custom_call.1']
    %7 = vsyncpa [#allocation3], 0
    %s8 = scalar_lea.sflag [#allocation3], 1
    %9 = vsyncpa %s8, 0
    loop: start=0, step=1, limit=4
    $region2: #{tpu_custom_call.1} parent=1 // loop_pre_header
      _
    $region3: #{tpu_custom_call.1} parent=1 // loop_header
      %s11 = sphi 0, %s15
      %p12 = scmp.ge.s32.totalorder %s11, 4
      %s19 = sphi 0, %s19
      %s21 = sphi 0, %s19
      %s22 = sphi 0, %s21
      %s36 = sphi 0, %s22
      %s42 = sphi 0, %s44
      %s45 = sphi 0, %s42
      %s46 = sphi 0, %s45
      %s62 = sphi 0, %s46
      %s68 = sphi 0, %s70
      %s71 = sphi 0, %s68
      %s72 = sphi 0, %s71
      %s88 = sphi 0, %s72
    $region4: #{tpu_custom_call.1} parent=1 // loop_header_branch
      %14 = sbr.rel (%p12) target = $region8
    $region5: #{tpu_custom_call.1} parent=1 // loop_body
      %s16 = ssub.s32 %s11, 1
      %s17 = ssub.s32 %s11, 2
      %s18 = sadd.s32 %s11, 1
      %s20 = sadd.s32 %s19, 1
      %p23 = scmp.eq.s32.totalorder %s11, 1
      %p24 = scmp.ne.s32.totalorder %s19, %s21
      %p25 = scmp.eq.s32.totalorder %s11, 0
      %p26 = por %p24, %p25
      %p27 = scmp.ne.s32.totalorder %s19, %s21
      %p28 = scmp.eq.s32.totalorder %s16, 1
      %p29 = por %p27, %p28
      %p30 = scmp.ne.s32.totalorder %s21, %s22
      %p31 = scmp.eq.s32.totalorder %s16, 0
      %p32 = por %p30, %p31
      %p33 = scmp.ne.s32.totalorder %s21, %s22
      %p34 = scmp.eq.s32.totalorder %s17, 1
      %p35 = por %p33, %p34
      %p37 = scmp.ne.s32.totalorder %s22, %s36
      %p38 = scmp.eq.s32.totalorder %s17, 0
      %p39 = por %p37, %p38
      %s40 = ssub.s32 %s11, %s18
      %p41 = scmp.eq.s32.totalorder %s40, 0
      %s43 = sadd.s32 %s42, 1
      %s44 = scalar_select %p41, %s42, %s43
      %p47 = pneg %p41
      %p48 = scmp.eq.s32.totalorder %s11, 1
      %p49 = por %p47, %p48
      %p50 = scmp.ne.s32.totalorder %s42, %s45
      %p51 = scmp.eq.s32.totalorder %s11, 0
      %p52 = por %p50, %p51
      %p53 = scmp.ne.s32.totalorder %s42, %s45
      %p54 = scmp.eq.s32.totalorder %s16, 1
      %p55 = por %p53, %p54
      %p56 = scmp.ne.s32.totalorder %s45, %s46
      %p57 = scmp.eq.s32.totalorder %s16, 0
      %p58 = por %p56, %p57
      %p59 = scmp.ne.s32.totalorder %s45, %s46
      %p60 = scmp.eq.s32.totalorder %s17, 1
      %p61 = por %p59, %p60
      %p63 = scmp.ne.s32.totalorder %s46, %s62
      %p64 = scmp.eq.s32.totalorder %s17, 0
      %p65 = por %p63, %p64
      %s66 = ssub.s32 %s11, %s18
      %p67 = scmp.eq.s32.totalorder %s66, 0
      %s69 = sadd.s32 %s68, 1
      %s70 = scalar_select %p67, %s68, %s69
      %p73 = pneg %p67
      %p74 = scmp.eq.s32.totalorder %s11, 1
      %p75 = por %p73, %p74
      %p76 = scmp.ne.s32.totalorder %s68, %s71
      %p77 = scmp.eq.s32.totalorder %s11, 0
      %p78 = por %p76, %p77
      %p79 = scmp.ne.s32.totalorder %s68, %s71
      %p80 = scmp.eq.s32.totalorder %s16, 1
      %p81 = por %p79, %p80
      %p82 = scmp.ne.s32.totalorder %s71, %s72
      %p83 = scmp.eq.s32.totalorder %s16, 0
      %p84 = por %p82, %p83
      %p85 = scmp.ne.s32.totalorder %s71, %s72
      %p86 = scmp.eq.s32.totalorder %s17, 1
      %p87 = por %p85, %p86
      %p89 = scmp.ne.s32.totalorder %s72, %s88
      %p90 = scmp.eq.s32.totalorder %s17, 0
      %p91 = por %p89, %p90
      %p92 = scmp.le.s32.totalorder 1, %s11
      %p93 = scmp.lt.s32.totalorder %s11, 3
      %p94 = pnand %p92, %p93
      %p95 = pneg %p94
      // Predicated region
      $region9: #{tpu_custom_call.1} parent=5 // pred_check
        _
      $region10: #{tpu_custom_call.1} parent=5 // pred_check_branch
        %97 = sbr.rel (%p94) target = $region12
      $region11: #{tpu_custom_call.1} parent=5 // pred_region
        %s98 = ssub.s32 %s11, 1
        // Predicated region
        $region13: #{tpu_custom_call.1} parent=11 // pred_check
          %p99 = pneg %p32
        $region14: #{tpu_custom_call.1} parent=11 // pred_check_branch
          %101 = sbr.rel (%p99) target = $region16
        $region15: #{tpu_custom_call.1} parent=11 // pred_region
          _
        $region16: #{tpu_custom_call.1} parent=11 // pred_fallthru
          _
        // Predicated region
        $region17: #{tpu_custom_call.1} parent=11 // pred_check
          %p102 = pneg %p58
        $region18: #{tpu_custom_call.1} parent=11 // pred_check_branch
          %104 = sbr.rel (%p102) target = $region20
        $region19: #{tpu_custom_call.1} parent=11 // pred_region
          %s105 = smul.u32 2, %s16
          %p106 = scmp.lt.s32.totalorder %s105, 3
          %s107 = scalar_select %p106, %s105, 3
          %s108 = smul.addr %s107, 8
          %s109 = scalar_lea.vmem %s1, %s108
          %s110 = smul.u32 2, %s16
        $region20: #{tpu_custom_call.1} parent=11 // pred_fallthru
          _
      $region12: #{tpu_custom_call.1} parent=5 // pred_fallthru
        _
      %p111 = scmp.lt.s32.totalorder %s11, 2
      // Predicated region
      $region21: #{tpu_custom_call.1} parent=5 // pred_check
        %p112 = pneg %p111
      $region22: #{tpu_custom_call.1} parent=5 // pred_check_branch
        %114 = sbr.rel (%p112) target = $region24
      $region23: #{tpu_custom_call.1} parent=5 // pred_region
        _
      $region24: #{tpu_custom_call.1} parent=5 // pred_fallthru
        _
      %p115 = scmp.le.s32.totalorder 1, %s11
      %p116 = scmp.lt.s32.totalorder %s11, 3
      %p117 = pnand %p115, %p116
      %p118 = pneg %p117
      // Predicated region
      $region25: #{tpu_custom_call.1} parent=5 // pred_check
        _
      $region26: #{tpu_custom_call.1} parent=5 // pred_check_branch
        %120 = sbr.rel (%p117) target = $region28
      $region27: #{tpu_custom_call.1} parent=5 // pred_region
        %s121 = ssub.s32 %s11, 1
        %p122 = pneg %p32
        %p123 = pneg %p29
        %s124 = smul.u32 2, %s16
        %p125 = scmp.lt.s32.totalorder %s124, 3
        %s126 = scalar_select %p125, %s124, 3
        %s127 = smul.addr %s126, 8
        %s128 = scalar_lea.vmem %s1, %s127
        %p129 = pneg %p58
        %p130 = pneg %p55
        %p131 = pneg %p84
        %p132 = pneg %p81
        %s133 = sand.u32 %s71, 1
        %s134 = scalar_lea.sflag [#allocation3], %s133
        %s135 = sand.u32 %s71, 1
        %s136 = smul.addr %s135, 8
        %s137 = scalar_lea.vmem [#allocation2], %s136
        %s138 = smul.u32 2, %s16
        %p139 = scmp.lt.s32.totalorder %s138, 3
        %s140 = scalar_select %p139, %s138, 3
        %s141 = smul.addr %s140, 8
        %s142 = scalar_lea.vmem %s1, %s141
        %s143 = smul.u32 2, %s16
        %v144 = vld [vmem:[%s0] sm:$0xff]
        %v145 = vld [vmem:[%s0 + $0x8] sm:$0xff]
        %v146 = vld [vmem:[%s0 + $0x10] sm:$0xff]
        %v147 = vld [vmem:[%s0 + $0x18] sm:$0xff]
        %v148 = vld [vmem:[%s0 + $0x20] sm:$0xff]
        %v149 = vld [vmem:[%s0 + $0x28] sm:$0xff]
        %v150 = vld [vmem:[%s0 + $0x30] sm:$0xff]
        %v151 = vld [vmem:[%s0 + $0x38] sm:$0xff]
        %v152 = vld [vmem:[%s0 + $0x40] sm:$0xff]
        %v153 = vld [vmem:[%s0 + $0x48] sm:$0xff]
        %v154 = vld [vmem:[%s0 + $0x50] sm:$0xff]
        %v155 = vld [vmem:[%s0 + $0x58] sm:$0xff]
        %v156 = vld [vmem:[%s0 + $0x60] sm:$0xff]
        %v157 = vld [vmem:[%s0 + $0x68] sm:$0xff]
        %v158 = vld [vmem:[%s0 + $0x70] sm:$0xff]
        %v159 = vld [vmem:[%s0 + $0x78] sm:$0xff]
        %v160 = vld [vmem:[%s142] sm:$0xff]
        %v161 = vld [vmem:[%s142 + $0x8] sm:$0xff]
        %v162 = vmul.u32 %v160, 16
        %v163 = vmul.u32 %v161, 16
        %164 = vrot.lane.b32.xlu0 %v160, 126
        %v165 = vpop.permute.xlu0 %164
        %166 = vrot.lane.b32.xlu0 %v161, 126
        %v167 = vpop.permute.xlu0 %166
        %v168 = vadd.s32 %v162, %v165
        %v169 = vadd.s32 %v163, %v167
        %v170 = vlaneseq
        %v171 = vand.u32 %v170, 127
        %172 = vset.pattern.permute.xlu0 0
        %173 = vperm.xlu0 %172, %v168
        %v174 = vpop.permute.xlu0 %173
        %175 = vset.pattern.permute.xlu0 0
        %176 = vperm.xlu0 %175, %v169
        %v177 = vpop.permute.xlu0 %176
        %vm178 = vcmp.eq.s32.totalorder %v171, %v174
        %vm179 = vcmp.eq.s32.totalorder %v171, %v177
        %v180 = vsel %vm178, 1, 0
        %v181 = vsel %vm179, 1, 0
        %v182 = vcvt.s32.f32 %v180
        %v183 = vcvt.s32.f32 %v181
        %184 = vmatpush.msra.mxu0 %v159
        %185 = vmatpush.msra.mxu0 %v158
        %186 = vmatpush.msra.mxu0 %v157
        %187 = vmatpush.msra.mxu0 %v156
        %188 = vmatpush.msra.mxu0 %v155
        %189 = vmatpush.msra.mxu0 %v154
        %190 = vmatpush.msra.mxu0 %v153
        %191 = vmatpush.msra.mxu0 %v152
        %192 = vmatpush.msra.mxu0 %v151
        %193 = vmatpush.msra.mxu0 %v150
        %194 = vmatpush.msra.mxu0 %v149
        %195 = vmatpush.msra.mxu0 %v148
        %196 = vmatpush.msra.mxu0 %v147
        %197 = vmatpush.msra.mxu0 %v146
        %198 = vmatpush.msra.mxu0 %v145
        %199 = vmatpush.msra.mxu0 %v144
        %200 = vmatmul.f32.gmra.mxu0 %v182
        %v201 = vpop.f32.mrf.mxu0
        %v202 = vadd.f32 0.0, %v201
        %203 = vmatmul.f32.gmra.mxu0 %v183
        %v204 = vpop.f32.mrf.mxu0
        %v205 = vadd.f32 0.0, %v204
        %206 = vdwg.mxu0
        %v207 = vmul.f32 %v202, %v202
        %v208 = vmul.f32 %v205, %v205
        %vm209 = vcmask 261120
        %v210 = vsel %vm209, %v207, 0.0
        %211 = vadd.xlane.f32.xlu0 %v210
        %v212 = vpop.xlane.xlu0 %211
        %v213 = vsel %vm209, %v208, 0.0
        %214 = vadd.xlane.f32.xlu0 %v213
        %v215 = vpop.xlane.xlu0 %214
        %v216 = vmul.f32 %v144, %v144
        %v217 = vmul.f32 %v145, %v145
        %v218 = vmul.f32 %v146, %v146
        %v219 = vmul.f32 %v147, %v147
        %v220 = vmul.f32 %v148, %v148
        %v221 = vmul.f32 %v149, %v149
        %v222 = vmul.f32 %v150, %v150
        %v223 = vmul.f32 %v151, %v151
        %v224 = vmul.f32 %v152, %v152
        %v225 = vmul.f32 %v153, %v153
        %v226 = vmul.f32 %v154, %v154
        %v227 = vmul.f32 %v155, %v155
        %v228 = vmul.f32 %v156, %v156
        %v229 = vmul.f32 %v157, %v157
        %v230 = vmul.f32 %v158, %v158
        %v231 = vmul.f32 %v159, %v159
        %v233 = vsel %vm209, 1.0, 0
        %v236 = vsel %vm209, %v216, 0
        %v239 = vsel %vm209, %v217, 0
        %v242 = vsel %vm209, %v218, 0
        %v245 = vsel %vm209, %v219, 0
        %v248 = vsel %vm209, %v220, 0
        %v251 = vsel %vm209, %v221, 0
        %v254 = vsel %vm209, %v222, 0
        %v257 = vsel %vm209, %v223, 0
        %v260 = vsel %vm209, %v224, 0
        %v263 = vsel %vm209, %v225, 0
        %v266 = vsel %vm209, %v226, 0
        %v269 = vsel %vm209, %v227, 0
        %v272 = vsel %vm209, %v228, 0
        %v275 = vsel %vm209, %v229, 0
        %v278 = vsel %vm209, %v230, 0
        %v281 = vsel %vm209, %v231, 0
        %283 = vmatpush.xpose.msra.mxu0 %v281
        %284 = vmatpush.xpose.msra.mxu0 %v278
        %285 = vmatpush.xpose.msra.mxu0 %v275
        %286 = vmatpush.xpose.msra.mxu0 %v272
        %287 = vmatpush.xpose.msra.mxu0 %v269
        %288 = vmatpush.xpose.msra.mxu0 %v266
        %289 = vmatpush.xpose.msra.mxu0 %v263
        %290 = vmatpush.xpose.msra.mxu0 %v260
        %291 = vmatpush.xpose.msra.mxu0 %v257
        %292 = vmatpush.xpose.msra.mxu0 %v254
        %293 = vmatpush.xpose.msra.mxu0 %v251
        %294 = vmatpush.xpose.msra.mxu0 %v248
        %295 = vmatpush.xpose.msra.mxu0 %v245
        %296 = vmatpush.xpose.msra.mxu0 %v242
        %297 = vmatpush.xpose.msra.mxu0 %v239
        %298 = vmatpush.xpose.msra.mxu0 %v236
        %299 = vmatmul.f32.gmra.mxu0 %v233
        %v300 = vpop.f32.mrf.mxu0
        %v301 = vadd.f32 0.0, %v300
        %302 = vdwg.mxu0
        %v304 = vsel %vm209, %v202, 0
        %v307 = vsel %vm209, %v205, 0
        %v310 = vsel %vm209, %v144, 0
        %v313 = vsel %vm209, %v145, 0
        %v316 = vsel %vm209, %v146, 0
        %v319 = vsel %vm209, %v147, 0
        %v322 = vsel %vm209, %v148, 0
        %v325 = vsel %vm209, %v149, 0
        %v328 = vsel %vm209, %v150, 0
        %v331 = vsel %vm209, %v151, 0
        %v334 = vsel %vm209, %v152, 0
        %v337 = vsel %vm209, %v153, 0
        %v340 = vsel %vm209, %v154, 0
        %v343 = vsel %vm209, %v155, 0
        %v346 = vsel %vm209, %v156, 0
        %v349 = vsel %vm209, %v157, 0
        %v352 = vsel %vm209, %v158, 0
        %v355 = vsel %vm209, %v159, 0
        %357 = vmatpush.xpose.msra.mxu0 %v355
        %358 = vmatpush.xpose.msra.mxu0 %v352
        %359 = vmatpush.xpose.msra.mxu0 %v349
        %360 = vmatpush.xpose.msra.mxu0 %v346
        %361 = vmatpush.xpose.msra.mxu0 %v343
        %362 = vmatpush.xpose.msra.mxu0 %v340
        %363 = vmatpush.xpose.msra.mxu0 %v337
        %364 = vmatpush.xpose.msra.mxu0 %v334
        %365 = vmatpush.xpose.msra.mxu0 %v331
        %366 = vmatpush.xpose.msra.mxu0 %v328
        %367 = vmatpush.xpose.msra.mxu0 %v325
        %368 = vmatpush.xpose.msra.mxu0 %v322
        %369 = vmatpush.xpose.msra.mxu0 %v319
        %370 = vmatpush.xpose.msra.mxu0 %v316
        %371 = vmatpush.xpose.msra.mxu0 %v313
        %372 = vmatpush.xpose.msra.mxu0 %v310
        %373 = vmatmul.f32.gmra.mxu0 %v304
        %v374 = vpop.f32.mrf.mxu0
        %v375 = vadd.f32 0.0, %v374
        %376 = vmatmul.f32.gmra.mxu0 %v307
        %v377 = vpop.f32.mrf.mxu0
        %v378 = vadd.f32 0.0, %v377
        %379 = vdwg.mxu0
        %v380 = vperm.slane %v301, 0
        %v381 = vadd.f32 %v380, %v212
        %v382 = vadd.f32 %v380, %v215
        %v383 = vmul.f32 %v375, 2.0
        %v384 = vmul.f32 %v378, 2.0
        %v385 = vsub.f32 %v381, %v383
        %v386 = vsub.f32 %v382, %v384
        %v387 = vsub.f32 0.0, %v385
        %v388 = vsub.f32 0.0, %v386
        %v389 = vmul.f32 %v387, 0.3125
        %v390 = vmul.f32 %v388, 0.3125
        %391 = vset.pattern.permute.xlu0 1
        %392 = vperm.xlu0 %391, %v162
        %v393 = vpop.permute.xlu0 %392
        %394 = vset.pattern.permute.xlu0 1
        %395 = vperm.xlu0 %394, %v163
        %v396 = vpop.permute.xlu0 %395
        %vm397 = vcmp.ge.s32.totalorder %v171, %v393
        %vm398 = vcmp.ge.s32.totalorder %v171, %v396
        %v399 = vadd.s32 %v162, 16
        %v400 = vadd.s32 %v163, 16
        %401 = vset.pattern.permute.xlu0 1
        %402 = vperm.xlu0 %401, %v399
        %v403 = vpop.permute.xlu0 %402
        %404 = vset.pattern.permute.xlu0 1
        %405 = vperm.xlu0 %404, %v400
        %v406 = vpop.permute.xlu0 %405
        %vm407 = vcmp.lt.s32.totalorder %v171, %v403
        %vm408 = vcmp.lt.s32.totalorder %v171, %v406
        %vm409 = vmand %vm397, %vm407
        %vm410 = vmand %vm398, %vm408
        %v411 = vsel %vm409, %v389, -1e+30
        %v412 = vsel %vm410, %v390, -1e+30
        %413 = vmax.xlane.f32.xlu0 %v411
        %v414 = vpop.xlane.xlu0 %413
        %415 = vmax.xlane.f32.xlu0 %v412
        %v416 = vpop.xlane.xlu0 %415
        %v417 = vsub.f32 %v411, %v414
        %v418 = vsub.f32 %v412, %v416
        %v419 = vmul.f32 %v417, 1.442695
        %v420 = vpow.pop %v419
        %v421 = vmul.f32 %v418, 1.442695
        %v422 = vpow.pop %v421
        %423 = vmatpush.msra.mxu0 %v159
        %424 = vmatpush.msra.mxu0 %v158
        %425 = vmatpush.msra.mxu0 %v157
        %426 = vmatpush.msra.mxu0 %v156
        %427 = vmatpush.msra.mxu0 %v155
        %428 = vmatpush.msra.mxu0 %v154
        %429 = vmatpush.msra.mxu0 %v153
        %430 = vmatpush.msra.mxu0 %v152
        %431 = vmatpush.msra.mxu0 %v151
        %432 = vmatpush.msra.mxu0 %v150
        %433 = vmatpush.msra.mxu0 %v149
        %434 = vmatpush.msra.mxu0 %v148
        %435 = vmatpush.msra.mxu0 %v147
        %436 = vmatpush.msra.mxu0 %v146
        %437 = vmatpush.msra.mxu0 %v145
        %438 = vmatpush.msra.mxu0 %v144
        %439 = vmatmul.f32.gmra.mxu0 %v420
        %v440 = vpop.f32.mrf.mxu0
        %v441 = vadd.f32 0.0, %v440
        %442 = vmatmul.f32.gmra.mxu0 %v422
        %v443 = vpop.f32.mrf.mxu0
        %v444 = vadd.f32 0.0, %v443
        %445 = vdwg.mxu0
        %446 = vadd.xlane.f32.xlu0 %v420
        %v447 = vpop.xlane.xlu0 %446
        %448 = vadd.xlane.f32.xlu0 %v422
        %v449 = vpop.xlane.xlu0 %448
        %v450 = vrcp.pop %v447
        %v451 = vmul.f32 %v447, %v450
        %v452 = vsub.f32 1.0, %v451
        %v453 = vmul.f32 %v450, %v452
        %v454 = vadd.f32 %v450, %v453
        %vm455 = vweird.f32 %v447
        %vm456 = vweird.f32 %v450
        %vm457 = vmor %vm455, %vm456
        %v458 = vsel %vm457, %v450, %v454
        %v459 = vand.u32 2147483647, %v447
        %vm460 = vcmp.eq.f32.partialorder %v459, 8.507059e+37
        %v461 = vand.u32 %v447, 2147483648
        %v462 = vor.u32 1.1754944e-38, %v461
        %v463 = vsel %vm460, %v462, %v458
        %v464 = vmul.f32 1.0, %v463
        %v465 = vrcp.pop %v449
        %v466 = vmul.f32 %v449, %v465
        %v467 = vsub.f32 1.0, %v466
        %v468 = vmul.f32 %v465, %v467
        %v469 = vadd.f32 %v465, %v468
        %vm470 = vweird.f32 %v449
        %vm471 = vweird.f32 %v465
        %vm472 = vmor %vm470, %vm471
        %v473 = vsel %vm472, %v465, %v469
        %v474 = vand.u32 2147483647, %v449
        %vm475 = vcmp.eq.f32.partialorder %v474, 8.507059e+37
        %v476 = vand.u32 %v449, 2147483648
        %v477 = vor.u32 1.1754944e-38, %v476
        %v478 = vsel %vm475, %v477, %v473
        %v479 = vmul.f32 1.0, %v478
        %v480 = vmul.f32 %v441, %v464
        %v481 = vmul.f32 %v444, %v479
        %v482 = vmul.f32 %v480, %v480
        %v483 = vmul.f32 %v481, %v481
        %v484 = vsel %vm209, %v482, 0.0
        %485 = vadd.xlane.f32.xlu0 %v484
        %v486 = vpop.xlane.xlu0 %485
        %v487 = vsel %vm209, %v483, 0.0
        %488 = vadd.xlane.f32.xlu0 %v487
        %v489 = vpop.xlane.xlu0 %488
        %v491 = vsel %vm209, %v480, 0
        %v494 = vsel %vm209, %v481, 0
        %496 = vmatpush.xpose.msra.mxu0 %v355
        %497 = vmatpush.xpose.msra.mxu0 %v352
        %498 = vmatpush.xpose.msra.mxu0 %v349
        %499 = vmatpush.xpose.msra.mxu0 %v346
        %500 = vmatpush.xpose.msra.mxu0 %v343
        %501 = vmatpush.xpose.msra.mxu0 %v340
        %502 = vmatpush.xpose.msra.mxu0 %v337
        %503 = vmatpush.xpose.msra.mxu0 %v334
        %504 = vmatpush.xpose.msra.mxu0 %v331
        %505 = vmatpush.xpose.msra.mxu0 %v328
        %506 = vmatpush.xpose.msra.mxu0 %v325
        %507 = vmatpush.xpose.msra.mxu0 %v322
        %508 = vmatpush.xpose.msra.mxu0 %v319
        %509 = vmatpush.xpose.msra.mxu0 %v316
        %510 = vmatpush.xpose.msra.mxu0 %v313
        %511 = vmatpush.xpose.msra.mxu0 %v310
        %512 = vmatmul.f32.gmra.mxu0 %v491
        %v513 = vpop.f32.mrf.mxu0
        %v514 = vadd.f32 0.0, %v513
        %515 = vmatmul.f32.gmra.mxu0 %v494
        %v516 = vpop.f32.mrf.mxu0
        %v517 = vadd.f32 0.0, %v516
        %518 = vdwg.mxu0
        %v519 = vadd.f32 %v380, %v486
        %v520 = vadd.f32 %v380, %v489
        %v521 = vmul.f32 %v514, 2.0
        %v522 = vmul.f32 %v517, 2.0
        %v523 = vsub.f32 %v519, %v521
        %v524 = vsub.f32 %v520, %v522
        %v525 = vsub.f32 0.0, %v523
        %v526 = vsub.f32 0.0, %v524
        %v527 = vmul.f32 %v525, 0.3125
        %v528 = vmul.f32 %v526, 0.3125
        %529 = vset.pattern.permute.xlu0 0
        %530 = vperm.xlu0 %529, %v162
        %v531 = vpop.permute.xlu0 %530
        %532 = vset.pattern.permute.xlu0 0
        %533 = vperm.xlu0 %532, %v163
        %v534 = vpop.permute.xlu0 %533
        %vm535 = vcmp.ge.s32.totalorder %v171, %v531
        %vm536 = vcmp.ge.s32.totalorder %v171, %v534
        %537 = vset.pattern.permute.xlu0 0
        %538 = vperm.xlu0 %537, %v399
        %v539 = vpop.permute.xlu0 %538
        %540 = vset.pattern.permute.xlu0 0
        %541 = vperm.xlu0 %540, %v400
        %v542 = vpop.permute.xlu0 %541
        %vm543 = vcmp.lt.s32.totalorder %v171, %v539
        %vm544 = vcmp.lt.s32.totalorder %v171, %v542
        %vm545 = vmand %vm535, %vm543
        %vm546 = vmand %vm536, %vm544
        %v547 = vsel %vm545, %v527, -1e+30
        %v548 = vsel %vm546, %v528, -1e+30
        %549 = vmax.xlane.f32.xlu0 %v547
        %v550 = vpop.xlane.xlu0 %549
        %551 = vmax.xlane.f32.xlu0 %v548
        %v552 = vpop.xlane.xlu0 %551
        %v553 = vsub.f32 %v547, %v550
        %v554 = vsub.f32 %v548, %v552
        %v555 = vmul.f32 %v553, 1.442695
        %v556 = vpow.pop %v555
        %v557 = vmul.f32 %v554, 1.442695
        %v558 = vpow.pop %v557
        %559 = vadd.xlane.f32.xlu0 %v556
        %v560 = vpop.xlane.xlu0 %559
        %561 = vadd.xlane.f32.xlu0 %v558
        %v562 = vpop.xlane.xlu0 %561
        %v563 = vrcp.pop %v560
        %v564 = vmul.f32 %v560, %v563
        %v565 = vsub.f32 1.0, %v564
        %v566 = vmul.f32 %v563, %v565
        %v567 = vadd.f32 %v563, %v566
        %vm568 = vweird.f32 %v560
        %vm569 = vweird.f32 %v563
        %vm570 = vmor %vm568, %vm569
        %v571 = vsel %vm570, %v563, %v567
        %v572 = vand.u32 2147483647, %v560
        %vm573 = vcmp.eq.f32.partialorder %v572, 8.507059e+37
        %v574 = vand.u32 %v560, 2147483648
        %v575 = vor.u32 1.1754944e-38, %v574
        %v576 = vsel %vm573, %v575, %v571
        %v577 = vmul.f32 1.0, %v576
        %v578 = vrcp.pop %v562
        %v579 = vmul.f32 %v562, %v578
        %v580 = vsub.f32 1.0, %v579
        %v581 = vmul.f32 %v578, %v580
        %v582 = vadd.f32 %v578, %v581
        %vm583 = vweird.f32 %v562
        %vm584 = vweird.f32 %v578
        %vm585 = vmor %vm583, %vm584
        %v586 = vsel %vm585, %v578, %v582
        %v587 = vand.u32 2147483647, %v562
        %vm588 = vcmp.eq.f32.partialorder %v587, 8.507059e+37
        %v589 = vand.u32 %v562, 2147483648
        %v590 = vor.u32 1.1754944e-38, %v589
        %v591 = vsel %vm588, %v590, %v586
        %v592 = vmul.f32 1.0, %v591
        %v593 = vsub.s32 %v171, %v531
        %v594 = vsub.s32 %v171, %v534
        %v595 = vcvt.s32.f32 %v593
        %v596 = vcvt.s32.f32 %v594
        %v597 = vmul.f32 %v595, 0.0625
        %v598 = vmul.f32 %v596, 0.0625
        %v599 = vcvt.s32.f32 %v160
        %v600 = vcvt.s32.f32 %v161
        %v601 = vmul.f32 %v599, 0.0625
        %v602 = vmul.f32 %v600, 0.0625
        %v603 = vmul.f32 %v597, %v556
        %v604 = vmul.f32 %v598, %v558
        %605 = vadd.xlane.f32.xlu0 %v603
        %v606 = vpop.xlane.xlu0 %605
        %607 = vadd.xlane.f32.xlu0 %v604
        %v608 = vpop.xlane.xlu0 %607
        %v609 = vmul.f32 %v606, %v577
        %v610 = vmul.f32 %v608, %v592
        %v611 = vsub.f32 %v597, %v609
        %v612 = vsub.f32 %v598, %v610
        %v613 = vmul.f32 %v611, %v611
        %v614 = vmul.f32 %v612, %v612
        %v615 = vmul.f32 %v613, %v556
        %v616 = vmul.f32 %v614, %v558
        %617 = vadd.xlane.f32.xlu0 %v615
        %v618 = vpop.xlane.xlu0 %617
        %619 = vadd.xlane.f32.xlu0 %v616
        %v620 = vpop.xlane.xlu0 %619
        %v621 = vmul.f32 %v618, %v577
        %v622 = vmul.f32 %v620, %v592
        %v623 = vadd.f32 %v621, 1e-07
        %v624 = vadd.f32 %v622, 1e-07
        %v625 = vlog2.pop %v623
        %v626 = vmul.f32 %v625, 0.6931472
        %v627 = vlog2.pop %v624
        %v628 = vmul.f32 %v627, 0.6931472
        %v629 = vsub.f32 %v601, %v609
        %v630 = vsub.f32 %v602, %v610
        %v631 = vrcp.pop %v623
        %v632 = vmul.f32 %v623, %v631
        %v633 = vsub.f32 1.0, %v632
        %v634 = vmul.f32 %v631, %v633
        %v635 = vadd.f32 %v631, %v634
        %vm636 = vweird.f32 %v623
        %vm637 = vweird.f32 %v631
        %vm638 = vmor %vm636, %vm637
        %v639 = vsel %vm638, %v631, %v635
        %v640 = vand.u32 2147483647, %v623
        %vm641 = vcmp.eq.f32.partialorder %v640, 8.507059e+37
        %v642 = vand.u32 %v623, 2147483648
        %v643 = vor.u32 1.1754944e-38, %v642
        %v644 = vsel %vm641, %v643, %v639
        %v645 = vrcp.pop %v624
        %v646 = vmul.f32 %v624, %v645
        %v647 = vsub.f32 1.0, %v646
        %v648 = vmul.f32 %v645, %v647
        %v649 = vadd.f32 %v645, %v648
        %vm650 = vweird.f32 %v624
        %vm651 = vweird.f32 %v645
        %vm652 = vmor %vm650, %vm651
        %v653 = vsel %vm652, %v645, %v649
        %v654 = vand.u32 2147483647, %v624
        %vm655 = vcmp.eq.f32.partialorder %v654, 8.507059e+37
        %v656 = vand.u32 %v624, 2147483648
        %v657 = vor.u32 1.1754944e-38, %v656
        %v658 = vsel %vm655, %v657, %v653
        %v659 = vmul.f32 %v629, %v629
        %v660 = vmul.f32 %v630, %v630
        %v661 = vmul.f32 %v644, %v659
        %v662 = vmul.f32 %v658, %v660
        %v663 = vmul.f32 %v626, 0.001
        %v664 = vmul.f32 %v628, 0.001
        %v665 = vadd.f32 %v661, %v663
        %v666 = vadd.f32 %v662, %v664
        %s667 = smul.u32 %s16, 10
        %s668 = ssub.s32 20, %s667
        %p669 = scmp.lt.s32.totalorder %s668, 10
        %s670 = scalar_select %p669, %s668, 10
        %v671 = vlaneseq
        %v672 = vshrl.u32 %v671, 7
        %v673 = vadd.s32 %v672, 8
        %v674 = vstv %s670
        %vm675 = vcmp.lt.s32.totalorder %v672, %v674
        %vm676 = vcmp.lt.s32.totalorder %v673, %v674
        %v677 = vsel %vm675, %v665, 0.0
        %v678 = vsel %vm676, %v666, 0.0
        %681 = vrot.lane.b32.xlu0 %v677, 126
        %v682 = vpop.permute.xlu0 %681
        %683 = vrot.lane.b32.xlu0 %v678, 126
        %v684 = vpop.permute.xlu0 %683
        %vm687 = vcmask 7168
        %v688 = vsel %vm687, %v682, 0.0
        %v689 = vsel %vm687, %v684, 0.0
        %v690 = vadd.f32 %v688, %v689
        %691 = vadd.xlane.f32.xlu0 %v690
        %v692 = vpop.xlane.xlu0 %691
        %v693 = vrot.slane %v692, 4
        %v694 = vadd.f32 %v692, %v693
        %v695 = vrot.slane %v694, 2
        %v696 = vadd.f32 %v694, %v695
        %v697 = vrot.slane %v696, 1
        %v698 = vadd.f32 %v696, %v697
        %s699 = vtos %v698
        %vm700 = vcmp.eq.s32.totalorder %v672, 0
        %vm701 = vcmp.eq.s32.totalorder %v171, 0
        %vm702 = vmand %vm700, %vm701
        %v703 = vstv %s699
        %v704 = vsel %vm702, %v703, 0.0
        %705 = vst [vmem:[%s137] sm:$0xff] %v704
        %s706 = sand.u32 %s71, 1
        %s707 = scalar_lea.sflag [#allocation3], %s706
        %s708 = sand.u32 %s71, 1
        %s709 = smul.addr %s708, 8
        %s710 = scalar_lea.vmem [#allocation2], %s709
        // Predicated region
        $region29: #{tpu_custom_call.1} parent=27 // pred_check
          %p711 = pneg %p81
        $region30: #{tpu_custom_call.1} parent=27 // pred_check_branch
          %713 = sbr.rel (%p711) target = $region32
        $region31: #{tpu_custom_call.1} parent=27 // pred_region
          %715 = vsyncadd %s707, 0
          %s716 = smul.addr %s16, 8
          %s717 = scalar_lea.hbm %s2, %s716
          %s719 = sshll.u32 %s710, 4
          %s720 = int_to_ptr.vmem [resolvable:$true] %s719
          %s721 = sshll.u32 %s717, 4
          %s722 = int_to_ptr.hbm [resolvable:$true] %s721
          %724 = dma.vmem_to_hbm [thread:$0]  %s720, 128, %s722, %s707
        $region32: #{tpu_custom_call.1} parent=27 // pred_fallthru
          _
      $region28: #{tpu_custom_call.1} parent=5 // pred_fallthru
        _
      %p725 = scmp.le.s32.totalorder 2, %s11
      // Predicated region
      $region33: #{tpu_custom_call.1} parent=5 // pred_check
        %p726 = pneg %p725
      $region34: #{tpu_custom_call.1} parent=5 // pred_check_branch
        %728 = sbr.rel (%p726) target = $region36
      $region35: #{tpu_custom_call.1} parent=5 // pred_region
        %s729 = ssub.s32 %s11, 2
        // Predicated region
        $region37: #{tpu_custom_call.1} parent=35 // pred_check
          %p730 = pneg %p87
        $region38: #{tpu_custom_call.1} parent=35 // pred_check_branch
          %732 = sbr.rel (%p730) target = $region40
        $region39: #{tpu_custom_call.1} parent=35 // pred_region
          %s733 = sand.u32 %s72, 1
          %s734 = scalar_lea.sflag [#allocation3], %s733
          %s735 = sand.u32 %s72, 1
          %s736 = smul.addr %s735, 8
          %s737 = scalar_lea.vmem [#allocation2], %s736
          %739 = dma.done %s734, 128
        $region40: #{tpu_custom_call.1} parent=35 // pred_fallthru
          _
      $region36: #{tpu_custom_call.1} parent=5 // pred_fallthru
        _
    $region6: #{tpu_custom_call.1} parent=1 // loop_footer
      %s15 = sadd.s32 1, %s11
    $region7: #{tpu_custom_call.1} parent=1 // loop_footer_branch
      %10 = sbr.rel target = $region3
    $region8: #{tpu_custom_call.1} parent=1 // loop_exit
      _
    %740 = vsyncpa [#allocation3], 1
    %s741 = scalar_lea.sflag [#allocation3], 1
    %742 = vsyncpa %s741, 1

</llo_original>
